<compile_context>
chip_gen: v5e
topology: v5e:2x2
jax: 0.10.0
libtpu: 0.0.40
codegen_flags: <defaults>
</compile_context>

<pallas_src>
import functools

import jax
import jax.numpy as jnp
from jax.experimental import pallas as pl
from jax.experimental.pallas import tpu as pltpu


def _mlp_kernel(x_ref, w1_ref, b1_ref, w2_ref, b2_ref, w3_ref, b3_ref, o_ref):
    # All three layers fused: the batch tile flows MXU -> VPU -> MXU without
    # leaving VMEM.  Dots take bf16 operands with f32 accumulation; the
    # bias/ReLU epilogue runs in the biases' dtype (bf16 on v6e/v7x, f32 on
    # v5e), which is what the wrapper passed in.
    ep = b1_ref.dtype
    x = x_ref[...]  # already bf16

    h1 = jnp.dot(x, w1_ref[...], preferred_element_type=jnp.float32)
    h1 = jnp.maximum(h1.astype(ep) + b1_ref[...], 0.0)

    h2 = jnp.dot(h1.astype(jnp.bfloat16), w2_ref[...],
                 preferred_element_type=jnp.float32)
    h2 = jnp.maximum(h2.astype(ep) + b2_ref[...], 0.0)

    h3 = jnp.dot(h2.astype(jnp.bfloat16), w3_ref[...],
                 preferred_element_type=jnp.float32)
    h3 = jnp.maximum(h3.astype(ep) + b3_ref[...], 0.0)

    o_ref[...] = h3.astype(o_ref.dtype)


def _choose_tm(batch):
    """Pick a power-of-two row tile <= 1024.

    Prefers the largest tile that (a) yields >= 2 grid steps (megacore /
    pipeline overlap) and (b) wastes <= ~12.5% of the last tile's rows, since
    partial-tile rows are masked but still computed.  Falls back to the
    largest tile with >= 2 steps, then to 8.
    """
    for tm in (1024, 512, 256, 128, 64, 32, 16, 8):
        n = -(-batch // tm)
        if n < 2 and batch > 8:
            continue
        waste = n * tm - batch
        if waste * 8 <= batch:            # <= 12.5% masked rows
            return tm
    tm = 1024
    while tm > 8 and -(-batch // tm) < 2:
        tm //= 2
    return tm


def _default_epilogue_dtype():
    """bf16 epilogue on chips with a bf16 VPU (v6e and later), f32 otherwise."""
    try:
        kind = jax.devices()[0].device_kind.lower()
    except Exception:  # no TPU visible at trace time etc.
        return jnp.float32
    if any(tag in kind for tag in ("v6", "v7")):
        return jnp.bfloat16
    return jnp.float32


@functools.partial(jax.jit, static_argnames=("tm", "out_dtype", "epilogue_dtype"))
def features_formulation_forward(x, params, *, tm=None, out_dtype=jnp.bfloat16,
                                 epilogue_dtype=None):
    """x: (B, 10) float32/bfloat16.  params: dict of pre-transposed weights.

    Weights are stored (in, out); PyTorch's (out, in) layout must be
    transposed before being put in `params` (init_params below does this).
    Compute contract: bf16 operands, f32 MXU accumulation, bf16 output by
    default.  Pass out_dtype=jnp.float32 for an f32 output.
    """
    if epilogue_dtype is None:
        epilogue_dtype = _default_epilogue_dtype()

    w1 = params["w1"].astype(jnp.bfloat16)       # (10, 128)
    w2 = params["w2"].astype(jnp.bfloat16)       # (128, 256)
    w3 = params["w3"].astype(jnp.bfloat16)       # (256, 256)
    b1 = params["b1"].astype(epilogue_dtype)     # (1, 128)
    b2 = params["b2"].astype(epilogue_dtype)     # (1, 256)
    b3 = params["b3"].astype(epilogue_dtype)     # (1, 256)

    x = x.astype(jnp.bfloat16)
    B, D_in = x.shape
    D_out = w3.shape[1]

    if tm is None:
        tm = _choose_tm(B)

    num_tiles = pl.cdiv(B, tm)   # partial last block is boundary-masked by Pallas

    def row_map(i):
        return (i, 0)

    def full_map(i):
        return (0, 0)

    flops = 2 * B * (D_in * 128 + 128 * 256 + 256 * 256)
    weight_bytes = sum(int(a.size) * a.dtype.itemsize
                       for a in (w1, b1, w2, b2, w3, b3))
    bytes_accessed = (B * D_in * 2 + B * D_out * jnp.dtype(out_dtype).itemsize
                      + weight_bytes)

    return pl.pallas_call(
        _mlp_kernel,
        out_shape=jax.ShapeDtypeStruct((B, D_out), out_dtype),
        grid_spec=pltpu.PrefetchScalarGridSpec(
            num_scalar_prefetch=0,
            grid=(num_tiles,),
            in_specs=[
                pl.BlockSpec((tm, D_in), row_map),   # x tile
                pl.BlockSpec(w1.shape, full_map),    # W1 (constant -> fetched once)
                pl.BlockSpec(b1.shape, full_map),    # b1
                pl.BlockSpec(w2.shape, full_map),    # W2
                pl.BlockSpec(b2.shape, full_map),    # b2
                pl.BlockSpec(w3.shape, full_map),    # W3
                pl.BlockSpec(b3.shape, full_map),    # b3
            ],
            out_specs=pl.BlockSpec((tm, D_out), row_map),
        ),
        compiler_params=pltpu.CompilerParams(
            dimension_semantics=("parallel",),
            vmem_limit_bytes=32 * 1024 * 1024,
        ),
        cost_estimate=pl.CostEstimate(
            flops=flops, transcendentals=0, bytes_accessed=bytes_accessed),
    )(x, w1, b1, w2, b2, w3, b3)


def init_params(key):
    """Deterministic init mimicking PyTorch Linear default U[-1/sqrt(fan_in), +].
    Weights stored pre-transposed as (in, out) in bf16; biases f32 as (1, out)."""
    ks = jax.random.split(key, 6)

    def linear(kw, kb, fan_in, fan_out):
        bound = 1.0 / jnp.sqrt(float(fan_in))
        w = jax.random.uniform(kw, (fan_in, fan_out), jnp.float32, -bound, bound)
        b = jax.random.uniform(kb, (1, fan_out), jnp.float32, -bound, bound)
        return w.astype(jnp.bfloat16), b

    w1, b1 = linear(ks[0], ks[1], 10, 128)
    w2, b2 = linear(ks[2], ks[3], 128, 256)
    w3, b3 = linear(ks[4], ks[5], 256, 256)
    return {"w1": w1, "b1": b1, "w2": w2, "b2": b2, "w3": w3, "b3": b3}


def reference_forward_matched(x, p, *, epilogue_dtype, out_dtype):
    """Pure-JAX reference mimicking the kernel's dtype pipeline exactly."""
    def lin(h, w, b):
        y = jnp.dot(h.astype(jnp.bfloat16), w.astype(jnp.bfloat16),
                    preferred_element_type=jnp.float32)
        y = y.astype(epilogue_dtype) + b.astype(epilogue_dtype)
        return jnp.maximum(y, 0.0)

    h = lin(x, p["w1"], p["b1"])
    h = lin(h, p["w2"], p["b2"])
    h = lin(h, p["w3"], p["b3"])
    return h.astype(out_dtype)


def reference_forward_f32(x, p):
    """Pure-f32 reference matching the original PyTorch module's math."""
    def lin(h, w, b):
        y = jnp.dot(h.astype(jnp.float32), w.astype(jnp.float32)) + b.astype(jnp.float32)
        return jnp.maximum(y, 0.0)

    h = lin(x, p["w1"], p["b1"])
    h = lin(h, p["w2"], p["b2"])
    return lin(h, p["w3"], p["b3"])


if __name__ == "__main__":
    key = jax.random.PRNGKey(0)
    k_x1, k_x2, k_p = jax.random.split(key, 3)
    params = init_params(k_p)
    ep_dtype = _default_epilogue_dtype()

    def check(x, tag):
        out = jax.block_until_ready(features_formulation_forward(x, params))
        assert out.shape == (x.shape[0], 256), out.shape
        assert out.dtype == jnp.bfloat16, out.dtype
        out_f32 = out.astype(jnp.float32)
        ref_m = reference_forward_matched(x, params, epilogue_dtype=ep_dtype,
                                          out_dtype=jnp.float32)
        ref_f = reference_forward_f32(x, params)
        assert jnp.allclose(out_f32, ref_m, atol=2e-2, rtol=2e-2), \
            f"mismatch vs dtype-matched reference ({tag})"
        assert jnp.allclose(out_f32, ref_f, atol=6e-2, rtol=6e-2), \
            f"drift vs f32 reference too large ({tag})"

    # Case 1: small batch, grid has exactly 2 full tiles.
    x1 = jax.random.normal(k_x1, (16, 10), jnp.float32)
    check(x1, "B=16")

    # Case 2: ragged batch exercises the boundary-masked partial last tile.
    x2 = jax.random.normal(k_x2, (13, 10), jnp.float32)
    check(x2, "B=13")

    print("KERNEL_OK")
</pallas_src>

<mosaic_0001>
module attributes {stable_mosaic.version = 11 : i64} {
  func.func @_mlp_kernel(%arg0: i32, %arg1: memref<8x10xbf16, #tpu.memory_space<vmem>>, %arg2: memref<10x128xbf16, #tpu.memory_space<vmem>>, %arg3: memref<1x128xf32, #tpu.memory_space<vmem>>, %arg4: memref<128x256xbf16, #tpu.memory_space<vmem>>, %arg5: memref<1x256xf32, #tpu.memory_space<vmem>>, %arg6: memref<256x256xbf16, #tpu.memory_space<vmem>>, %arg7: memref<1x256xf32, #tpu.memory_space<vmem>>, %arg8: memref<8x256xbf16, #tpu.memory_space<vmem>>) attributes {dimension_semantics = [#tpu.dimension_semantics<parallel>], iteration_bounds = array<i64: 2>, scalar_prefetch = 0 : i64, scratch_operands = 0 : i64, tpu.core_type = #tpu.core_type<tc>, window_params = [{transform_indices = @transform_0, window_bounds = array<i64: 8, 10>}, {pipeline_mode = #tpu.pipeline_mode<synchronous>, transform_indices = @transform_1, window_bounds = array<i64: 10, 128>}, {pipeline_mode = #tpu.pipeline_mode<synchronous>, transform_indices = @transform_2, window_bounds = array<i64: 1, 128>}, {pipeline_mode = #tpu.pipeline_mode<synchronous>, transform_indices = @transform_3, window_bounds = array<i64: 128, 256>}, {pipeline_mode = #tpu.pipeline_mode<synchronous>, transform_indices = @transform_4, window_bounds = array<i64: 1, 256>}, {pipeline_mode = #tpu.pipeline_mode<synchronous>, transform_indices = @transform_5, window_bounds = array<i64: 256, 256>}, {pipeline_mode = #tpu.pipeline_mode<synchronous>, transform_indices = @transform_6, window_bounds = array<i64: 1, 256>}, {transform_indices = @transform_7, window_bounds = array<i64: 8, 256>}]} {
    %c0 = arith.constant 0 : index
    %c0_0 = arith.constant 0 : index
    %0 = vector.load %arg1[%c0, %c0_0] : memref<8x10xbf16, #tpu.memory_space<vmem>>, vector<8x10xbf16>
    %c0_1 = arith.constant 0 : index
    %c0_2 = arith.constant 0 : index
    %1 = vector.load %arg2[%c0_1, %c0_2] : memref<10x128xbf16, #tpu.memory_space<vmem>>, vector<10x128xbf16>
    %cst = arith.constant dense<0.000000e+00> : vector<8x128xf32>
    %2 = tpu.matmul %0, %1, %cst {dimension_numbers = #tpu.dot_dimension_numbers<[1], [0], [0], [1], [0, 0, 1, 1], [], []>} : vector<8x10xbf16>, vector<10x128xbf16>, vector<8x128xf32> -> vector<8x128xf32>
    %c0_3 = arith.constant 0 : index
    %c0_4 = arith.constant 0 : index
    %3 = vector.load %arg3[%c0_3, %c0_4] : memref<1x128xf32, #tpu.memory_space<vmem>>, vector<1x128xf32>
    %4 = vector.broadcast %3 : vector<1x128xf32> to vector<8x128xf32>
    %5 = arith.addf %2, %4 : vector<8x128xf32>
    %cst_5 = arith.constant 0.000000e+00 : f32
    %6 = vector.broadcast %cst_5 : f32 to vector<8x128xf32>
    %7 = arith.maximumf %5, %6 : vector<8x128xf32>
    %8 = arith.truncf %7 : vector<8x128xf32> to vector<8x128xbf16>
    %c0_6 = arith.constant 0 : index
    %c0_7 = arith.constant 0 : index
    %9 = vector.load %arg4[%c0_6, %c0_7] : memref<128x256xbf16, #tpu.memory_space<vmem>>, vector<128x256xbf16>
    %cst_8 = arith.constant dense<0.000000e+00> : vector<8x256xf32>
    %10 = tpu.matmul %8, %9, %cst_8 {dimension_numbers = #tpu.dot_dimension_numbers<[1], [0], [0], [1], [0, 0, 1, 1], [], []>} : vector<8x128xbf16>, vector<128x256xbf16>, vector<8x256xf32> -> vector<8x256xf32>
    %c0_9 = arith.constant 0 : index
    %c0_10 = arith.constant 0 : index
    %11 = vector.load %arg5[%c0_9, %c0_10] : memref<1x256xf32, #tpu.memory_space<vmem>>, vector<1x256xf32>
    %12 = vector.broadcast %11 : vector<1x256xf32> to vector<8x256xf32>
    %13 = arith.addf %10, %12 : vector<8x256xf32>
    %cst_11 = arith.constant 0.000000e+00 : f32
    %14 = vector.broadcast %cst_11 : f32 to vector<8x256xf32>
    %15 = arith.maximumf %13, %14 : vector<8x256xf32>
    %16 = arith.truncf %15 : vector<8x256xf32> to vector<8x256xbf16>
    %c0_12 = arith.constant 0 : index
    %c0_13 = arith.constant 0 : index
    %17 = vector.load %arg6[%c0_12, %c0_13] : memref<256x256xbf16, #tpu.memory_space<vmem>>, vector<256x256xbf16>
    %cst_14 = arith.constant dense<0.000000e+00> : vector<8x256xf32>
    %18 = tpu.matmul %16, %17, %cst_14 {dimension_numbers = #tpu.dot_dimension_numbers<[1], [0], [0], [1], [0, 0, 1, 1], [], []>} : vector<8x256xbf16>, vector<256x256xbf16>, vector<8x256xf32> -> vector<8x256xf32>
    %c0_15 = arith.constant 0 : index
    %c0_16 = arith.constant 0 : index
    %19 = vector.load %arg7[%c0_15, %c0_16] : memref<1x256xf32, #tpu.memory_space<vmem>>, vector<1x256xf32>
    %20 = vector.broadcast %19 : vector<1x256xf32> to vector<8x256xf32>
    %21 = arith.addf %18, %20 : vector<8x256xf32>
    %cst_17 = arith.constant 0.000000e+00 : f32
    %22 = vector.broadcast %cst_17 : f32 to vector<8x256xf32>
    %23 = arith.maximumf %21, %22 : vector<8x256xf32>
    %24 = arith.truncf %23 : vector<8x256xf32> to vector<8x256xbf16>
    %c0_18 = arith.constant 0 : index
    %c0_19 = arith.constant 0 : index
    %25 = vector.load %arg8[%c0_18, %c0_19] : memref<8x256xbf16, #tpu.memory_space<vmem>>, vector<8x256xbf16>
    tpu.vector_store %arg8[%c0_18, %c0_19], %24 {strides = array<i32>} : memref<8x256xbf16, #tpu.memory_space<vmem>>, vector<8x256xbf16>,
    return
  }
  func.func @transform_0(%arg0: i32) -> (i32, i32) {
    %c0_i32 = arith.constant 0 : i32
    %c0_i32_0 = arith.constant 0 : i32
    return %arg0, %c0_i32 : i32, i32
  }
  func.func @transform_1(%arg0: i32) -> (i32, i32) {
    %c0_i32 = arith.constant 0 : i32
    %c0_i32_0 = arith.constant 0 : i32
    %c0_i32_1 = arith.constant 0 : i32
    return %c0_i32, %c0_i32_0 : i32, i32
  }
  func.func @transform_2(%arg0: i32) -> (i32, i32) {
    %c0_i32 = arith.constant 0 : i32
    %c0_i32_0 = arith.constant 0 : i32
    %c0_i32_1 = arith.constant 0 : i32
    return %c0_i32, %c0_i32_0 : i32, i32
  }
  func.func @transform_3(%arg0: i32) -> (i32, i32) {
    %c0_i32 = arith.constant 0 : i32
    %c0_i32_0 = arith.constant 0 : i32
    %c0_i32_1 = arith.constant 0 : i32
    return %c0_i32, %c0_i32_0 : i32, i32
  }
  func.func @transform_4(%arg0: i32) -> (i32, i32) {
    %c0_i32 = arith.constant 0 : i32
    %c0_i32_0 = arith.constant 0 : i32
    %c0_i32_1 = arith.constant 0 : i32
    return %c0_i32, %c0_i32_0 : i32, i32
  }
  func.func @transform_5(%arg0: i32) -> (i32, i32) {
    %c0_i32 = arith.constant 0 : i32
    %c0_i32_0 = arith.constant 0 : i32
    %c0_i32_1 = arith.constant 0 : i32
    return %c0_i32, %c0_i32_0 : i32, i32
  }
  func.func @transform_6(%arg0: i32) -> (i32, i32) {
    %c0_i32 = arith.constant 0 : i32
    %c0_i32_0 = arith.constant 0 : i32
    %c0_i32_1 = arith.constant 0 : i32
    return %c0_i32, %c0_i32_0 : i32, i32
  }
  func.func @transform_7(%arg0: i32) -> (i32, i32) {
    %c0_i32 = arith.constant 0 : i32
    %c0_i32_0 = arith.constant 0 : i32
    return %arg0, %c0_i32 : i32, i32
  }
}

</mosaic_0001>

<llo_original>
// kernel: features_formulation_forward.1
$region0: #{features_formulation_forward.1}
  #allocation0 [shape = 'u32[]', space=smem, size = 0x4, offset = 0x4, fixed_abs, tag = 'smem constant byte address 0x4 - core index']
  #allocation1 [shape = 'u32[72,128]{1,0:T(1,128)}', space=vmem, size = 0x9000, scoped, tag = 'internal scratch']
  %s0 = inlined_call_operand.vmem [shape: bf16[16,10], index: 0, kind: input, shape index: {}]
  %s1 = inlined_call_operand.vmem [shape: bf16[10,128], index: 1, kind: input, shape index: {}]
  %s2 = inlined_call_operand.vmem [shape: f32[1,128], index: 2, kind: input, shape index: {}]
  %s3 = inlined_call_operand.hbm [shape: bf16[128,256], index: 3, kind: input, shape index: {}]
  %s4 = inlined_call_operand.vmem [shape: f32[1,256], index: 4, kind: input, shape index: {}]
  %s5 = inlined_call_operand.hbm [shape: bf16[256,256], index: 5, kind: input, shape index: {}]
  %s6 = inlined_call_operand.vmem [shape: f32[1,256], index: 6, kind: input, shape index: {}]
  %s7 = inlined_call_operand.hbm [shape: bf16[16,256], index: 7, kind: output, shape index: {}]
  %s8 = sld [smem:[#allocation0]]
  $region69: #{features_formulation_forward.1} parent=0
    _
  %s10 = ssub.s32 1, %s8
  %s11 = scalar_select 0, %s10, %s8
  $region1: #{features_formulation_forward.1} parent=0
    #allocation2 [shape = 'u8[65536]{0}', space=vmem, size = 0x10000, scoped, tag = 'input window, operand 3, single buffered']
    #allocation3 [shape = 's32[2]{0}', space=sflag, size = 0x8, scoped, tag = 'scoped memory for features_formulation_forward.1']
    #allocation4 [shape = 's32[2]{0}', space=sflag, size = 0x8, scoped, tag = 'scoped memory for features_formulation_forward.1']
    #allocation5 [shape = 'u8[131072]{0}', space=vmem, size = 0x20000, scoped, tag = 'input window, operand 5, single buffered']
    #allocation6 [shape = 's32[1]{0}', space=sflag, size = 0x4, scoped, tag = 'scoped memory for features_formulation_forward.1']
    #allocation7 [shape = 'u8[8192]{0}', space=vmem, size = 0x2000, scoped, tag = 'output window, operand 0']
    %12 = vsyncpa [#allocation3], 0
    %13 = vsyncpa [#allocation6], 0
    %14 = vsyncpa [#allocation4], 0
    %s15 = scalar_lea.sflag [#allocation4], 1
    %16 = vsyncpa %s15, 0
    loop: start=0, step=1, limit=4
    $region2: #{features_formulation_forward.1} parent=1 // loop_pre_header
      _
    $region3: #{features_formulation_forward.1} parent=1 // loop_header
      %s18 = sphi 0, %s22
      %p19 = scmp.ge.s32.totalorder %s18, 4
      %s28 = sphi 0, %s30
      %s31 = sphi 0, %s28
      %s32 = sphi 0, %s31
      %s48 = sphi 0, %s32
      %s52 = sphi 0, %s52
      %s54 = sphi 0, %s52
      %s55 = sphi 0, %s54
      %s69 = sphi 0, %s55
      %s73 = sphi 0, %s73
      %s75 = sphi 0, %s73
      %s76 = sphi 0, %s75
      %s90 = sphi 0, %s76
      %s94 = sphi 0, %s94
      %s96 = sphi 0, %s94
      %s97 = sphi 0, %s96
      %s111 = sphi 0, %s97
      %s115 = sphi 0, %s115
      %s117 = sphi 0, %s115
      %s118 = sphi 0, %s117
      %s132 = sphi 0, %s118
      %s136 = sphi 0, %s136
      %s138 = sphi 0, %s136
      %s139 = sphi 0, %s138
      %s153 = sphi 0, %s139
      %s157 = sphi 0, %s157
      %s159 = sphi 0, %s157
      %s160 = sphi 0, %s159
      %s174 = sphi 0, %s160
      %s180 = sphi 0, %s182
      %s183 = sphi 0, %s180
      %s184 = sphi 0, %s183
      %s200 = sphi 0, %s184
    $region4: #{features_formulation_forward.1} parent=1 // loop_header_branch
      %21 = sbr.rel (%p19) target = $region8
    $region5: #{features_formulation_forward.1} parent=1 // loop_body
      %s23 = ssub.s32 %s18, 1
      %s24 = ssub.s32 %s18, 2
      %s25 = sadd.s32 %s18, 1
      %s26 = ssub.s32 %s18, %s25
      %p27 = scmp.eq.s32.totalorder %s26, 0
      %s29 = sadd.s32 %s28, 1
      %s30 = scalar_select %p27, %s28, %s29
      %p33 = pneg %p27
      %p34 = scmp.eq.s32.totalorder %s18, 1
      %p35 = por %p33, %p34
      %p36 = scmp.ne.s32.totalorder %s28, %s31
      %p37 = scmp.eq.s32.totalorder %s18, 0
      %p38 = por %p36, %p37
      %p39 = scmp.ne.s32.totalorder %s28, %s31
      %p40 = scmp.eq.s32.totalorder %s23, 1
      %p41 = por %p39, %p40
      %p42 = scmp.ne.s32.totalorder %s31, %s32
      %p43 = scmp.eq.s32.totalorder %s23, 0
      %p44 = por %p42, %p43
      %p45 = scmp.ne.s32.totalorder %s31, %s32
      %p46 = scmp.eq.s32.totalorder %s24, 1
      %p47 = por %p45, %p46
      %p49 = scmp.ne.s32.totalorder %s32, %s48
      %p50 = scmp.eq.s32.totalorder %s24, 0
      %p51 = por %p49, %p50
      %s53 = sadd.s32 %s52, 1
      %p56 = scmp.eq.s32.totalorder %s18, 1
      %p57 = scmp.ne.s32.totalorder %s52, %s54
      %p58 = scmp.eq.s32.totalorder %s18, 0
      %p59 = por %p57, %p58
      %p60 = scmp.ne.s32.totalorder %s52, %s54
      %p61 = scmp.eq.s32.totalorder %s23, 1
      %p62 = por %p60, %p61
      %p63 = scmp.ne.s32.totalorder %s54, %s55
      %p64 = scmp.eq.s32.totalorder %s23, 0
      %p65 = por %p63, %p64
      %p66 = scmp.ne.s32.totalorder %s54, %s55
      %p67 = scmp.eq.s32.totalorder %s24, 1
      %p68 = por %p66, %p67
      %p70 = scmp.ne.s32.totalorder %s55, %s69
      %p71 = scmp.eq.s32.totalorder %s24, 0
      %p72 = por %p70, %p71
      %s74 = sadd.s32 %s73, 1
      %p77 = scmp.eq.s32.totalorder %s18, 1
      %p78 = scmp.ne.s32.totalorder %s73, %s75
      %p79 = scmp.eq.s32.totalorder %s18, 0
      %p80 = por %p78, %p79
      %p81 = scmp.ne.s32.totalorder %s73, %s75
      %p82 = scmp.eq.s32.totalorder %s23, 1
      %p83 = por %p81, %p82
      %p84 = scmp.ne.s32.totalorder %s75, %s76
      %p85 = scmp.eq.s32.totalorder %s23, 0
      %p86 = por %p84, %p85
      %p87 = scmp.ne.s32.totalorder %s75, %s76
      %p88 = scmp.eq.s32.totalorder %s24, 1
      %p89 = por %p87, %p88
      %p91 = scmp.ne.s32.totalorder %s76, %s90
      %p92 = scmp.eq.s32.totalorder %s24, 0
      %p93 = por %p91, %p92
      %s95 = sadd.s32 %s94, 1
      %p98 = scmp.eq.s32.totalorder %s18, 1
      %p99 = scmp.ne.s32.totalorder %s94, %s96
      %p100 = scmp.eq.s32.totalorder %s18, 0
      %p101 = por %p99, %p100
      %p102 = scmp.ne.s32.totalorder %s94, %s96
      %p103 = scmp.eq.s32.totalorder %s23, 1
      %p104 = por %p102, %p103
      %p105 = scmp.ne.s32.totalorder %s96, %s97
      %p106 = scmp.eq.s32.totalorder %s23, 0
      %p107 = por %p105, %p106
      %p108 = scmp.ne.s32.totalorder %s96, %s97
      %p109 = scmp.eq.s32.totalorder %s24, 1
      %p110 = por %p108, %p109
      %p112 = scmp.ne.s32.totalorder %s97, %s111
      %p113 = scmp.eq.s32.totalorder %s24, 0
      %p114 = por %p112, %p113
      %s116 = sadd.s32 %s115, 1
      %p119 = scmp.eq.s32.totalorder %s18, 1
      %p120 = scmp.ne.s32.totalorder %s115, %s117
      %p121 = scmp.eq.s32.totalorder %s18, 0
      %p122 = por %p120, %p121
      %p123 = scmp.ne.s32.totalorder %s115, %s117
      %p124 = scmp.eq.s32.totalorder %s23, 1
      %p125 = por %p123, %p124
      %p126 = scmp.ne.s32.totalorder %s117, %s118
      %p127 = scmp.eq.s32.totalorder %s23, 0
      %p128 = por %p126, %p127
      %p129 = scmp.ne.s32.totalorder %s117, %s118
      %p130 = scmp.eq.s32.totalorder %s24, 1
      %p131 = por %p129, %p130
      %p133 = scmp.ne.s32.totalorder %s118, %s132
      %p134 = scmp.eq.s32.totalorder %s24, 0
      %p135 = por %p133, %p134
      %s137 = sadd.s32 %s136, 1
      %p140 = scmp.eq.s32.totalorder %s18, 1
      %p141 = scmp.ne.s32.totalorder %s136, %s138
      %p142 = scmp.eq.s32.totalorder %s18, 0
      %p143 = por %p141, %p142
      %p144 = scmp.ne.s32.totalorder %s136, %s138
      %p145 = scmp.eq.s32.totalorder %s23, 1
      %p146 = por %p144, %p145
      %p147 = scmp.ne.s32.totalorder %s138, %s139
      %p148 = scmp.eq.s32.totalorder %s23, 0
      %p149 = por %p147, %p148
      %p150 = scmp.ne.s32.totalorder %s138, %s139
      %p151 = scmp.eq.s32.totalorder %s24, 1
      %p152 = por %p150, %p151
      %p154 = scmp.ne.s32.totalorder %s139, %s153
      %p155 = scmp.eq.s32.totalorder %s24, 0
      %p156 = por %p154, %p155
      %s158 = sadd.s32 %s157, 1
      %p161 = scmp.eq.s32.totalorder %s18, 1
      %p162 = scmp.ne.s32.totalorder %s157, %s159
      %p163 = scmp.eq.s32.totalorder %s18, 0
      %p164 = por %p162, %p163
      %p165 = scmp.ne.s32.totalorder %s157, %s159
      %p166 = scmp.eq.s32.totalorder %s23, 1
      %p167 = por %p165, %p166
      %p168 = scmp.ne.s32.totalorder %s159, %s160
      %p169 = scmp.eq.s32.totalorder %s23, 0
      %p170 = por %p168, %p169
      %p171 = scmp.ne.s32.totalorder %s159, %s160
      %p172 = scmp.eq.s32.totalorder %s24, 1
      %p173 = por %p171, %p172
      %p175 = scmp.ne.s32.totalorder %s160, %s174
      %p176 = scmp.eq.s32.totalorder %s24, 0
      %p177 = por %p175, %p176
      %s178 = ssub.s32 %s18, %s25
      %p179 = scmp.eq.s32.totalorder %s178, 0
      %s181 = sadd.s32 %s180, 1
      %s182 = scalar_select %p179, %s180, %s181
      %p185 = pneg %p179
      %p186 = scmp.eq.s32.totalorder %s18, 1
      %p187 = por %p185, %p186
      %p188 = scmp.ne.s32.totalorder %s180, %s183
      %p189 = scmp.eq.s32.totalorder %s18, 0
      %p190 = por %p188, %p189
      %p191 = scmp.ne.s32.totalorder %s180, %s183
      %p192 = scmp.eq.s32.totalorder %s23, 1
      %p193 = por %p191, %p192
      %p194 = scmp.ne.s32.totalorder %s183, %s184
      %p195 = scmp.eq.s32.totalorder %s23, 0
      %p196 = por %p194, %p195
      %p197 = scmp.ne.s32.totalorder %s183, %s184
      %p198 = scmp.eq.s32.totalorder %s24, 1
      %p199 = por %p197, %p198
      %p201 = scmp.ne.s32.totalorder %s184, %s200
      %p202 = scmp.eq.s32.totalorder %s24, 0
      %p203 = por %p201, %p202
      %p204 = scmp.le.s32.totalorder 1, %s18
      %p205 = scmp.lt.s32.totalorder %s18, 3
      %p206 = pnand %p204, %p205
      %p207 = pneg %p206
      // Predicated region
      $region9: #{features_formulation_forward.1} parent=5 // pred_check
        _
      $region10: #{features_formulation_forward.1} parent=5 // pred_check_branch
        %209 = sbr.rel (%p206) target = $region12
      $region11: #{features_formulation_forward.1} parent=5 // pred_region
        %s210 = ssub.s32 %s18, 1
        // Predicated region
        $region13: #{features_formulation_forward.1} parent=11 // pred_check
          %p211 = pneg %p65
        $region14: #{features_formulation_forward.1} parent=11 // pred_check_branch
          %213 = sbr.rel (%p211) target = $region16
        $region15: #{features_formulation_forward.1} parent=11 // pred_region
          _
        $region16: #{features_formulation_forward.1} parent=11 // pred_fallthru
          _
        // Predicated region
        $region17: #{features_formulation_forward.1} parent=11 // pred_check
          %p214 = pneg %p86
        $region18: #{features_formulation_forward.1} parent=11 // pred_check_branch
          %216 = sbr.rel (%p214) target = $region20
        $region19: #{features_formulation_forward.1} parent=11 // pred_region
          _
        $region20: #{features_formulation_forward.1} parent=11 // pred_fallthru
          _
        // Predicated region
        $region21: #{features_formulation_forward.1} parent=11 // pred_check
          %p217 = pneg %p107
        $region22: #{features_formulation_forward.1} parent=11 // pred_check_branch
          %219 = sbr.rel (%p217) target = $region24
        $region23: #{features_formulation_forward.1} parent=11 // pred_region
          %221 = vsyncadd [#allocation3], 0
          %s222 = sshll.u32 %s3, 4
          %s223 = int_to_ptr.hbm [resolvable:$true] %s222
          %s224 = sshll.u32 [#allocation2], 4
          %s225 = int_to_ptr.vmem [resolvable:$true] %s224
          %230 = dma.hbm_to_vmem [thread:$0]  %s223, 2048, %s225, [#allocation3], 128, 128, 8
        $region24: #{features_formulation_forward.1} parent=11 // pred_fallthru
          _
        // Predicated region
        $region25: #{features_formulation_forward.1} parent=11 // pred_check
          %p231 = pneg %p128
        $region26: #{features_formulation_forward.1} parent=11 // pred_check_branch
          %233 = sbr.rel (%p231) target = $region28
        $region27: #{features_formulation_forward.1} parent=11 // pred_region
          _
        $region28: #{features_formulation_forward.1} parent=11 // pred_fallthru
          _
        // Predicated region
        $region29: #{features_formulation_forward.1} parent=11 // pred_check
          %p234 = pneg %p149
        $region30: #{features_formulation_forward.1} parent=11 // pred_check_branch
          %236 = sbr.rel (%p234) target = $region32
        $region31: #{features_formulation_forward.1} parent=11 // pred_region
          %238 = vsyncadd [#allocation6], 0
          %s239 = sshll.u32 %s5, 4
          %s240 = int_to_ptr.hbm [resolvable:$true] %s239
          %s241 = sshll.u32 [#allocation5], 4
          %s242 = int_to_ptr.vmem [resolvable:$true] %s241
          %247 = dma.hbm_to_vmem [thread:$0]  %s240, 4096, %s242, [#allocation6], 128, 128, 8
        $region32: #{features_formulation_forward.1} parent=11 // pred_fallthru
          _
        // Predicated region
        $region33: #{features_formulation_forward.1} parent=11 // pred_check
          %p248 = pneg %p170
        $region34: #{features_formulation_forward.1} parent=11 // pred_check_branch
          %250 = sbr.rel (%p248) target = $region36
        $region35: #{features_formulation_forward.1} parent=11 // pred_region
          _
        $region36: #{features_formulation_forward.1} parent=11 // pred_fallthru
          _
      $region12: #{features_formulation_forward.1} parent=5 // pred_fallthru
        _
      %p251 = scmp.lt.s32.totalorder %s18, 2
      // Predicated region
      $region37: #{features_formulation_forward.1} parent=5 // pred_check
        %p252 = pneg %p251
      $region38: #{features_formulation_forward.1} parent=5 // pred_check_branch
        %254 = sbr.rel (%p252) target = $region40
      $region39: #{features_formulation_forward.1} parent=5 // pred_region
        // Predicated region
        $region41: #{features_formulation_forward.1} parent=39 // pred_check
          %p255 = pneg %p38
        $region42: #{features_formulation_forward.1} parent=39 // pred_check_branch
          %257 = sbr.rel (%p255) target = $region44
        $region43: #{features_formulation_forward.1} parent=39 // pred_region
          %p258 = scmp.lt.s32.totalorder %s18, 1
          %s259 = scalar_select %p258, %s18, 1
          %s260 = smul.addr %s259, 4
          %s261 = scalar_lea.vmem %s0, %s260
        $region44: #{features_formulation_forward.1} parent=39 // pred_fallthru
          _
      $region40: #{features_formulation_forward.1} parent=5 // pred_fallthru
        _
      %p262 = scmp.le.s32.totalorder 1, %s18
      %p263 = scmp.lt.s32.totalorder %s18, 3
      %p264 = pnand %p262, %p263
      %p265 = pneg %p264
      // Predicated region
      $region45: #{features_formulation_forward.1} parent=5 // pred_check
        _
      $region46: #{features_formulation_forward.1} parent=5 // pred_check_branch
        %267 = sbr.rel (%p264) target = $region48
      $region47: #{features_formulation_forward.1} parent=5 // pred_region
        %s268 = ssub.s32 %s18, 1
        // Predicated region
        $region49: #{features_formulation_forward.1} parent=47 // pred_check
          %p269 = pneg %p107
        $region50: #{features_formulation_forward.1} parent=47 // pred_check_branch
          %271 = sbr.rel (%p269) target = $region52
        $region51: #{features_formulation_forward.1} parent=47 // pred_region
          %273 = dma.done [#allocation3], 2048
        $region52: #{features_formulation_forward.1} parent=47 // pred_fallthru
          _
        // Predicated region
        $region53: #{features_formulation_forward.1} parent=47 // pred_check
          %p274 = pneg %p149
        $region54: #{features_formulation_forward.1} parent=47 // pred_check_branch
          %276 = sbr.rel (%p274) target = $region56
        $region55: #{features_formulation_forward.1} parent=47 // pred_region
          %278 = dma.done [#allocation6], 4096
        $region56: #{features_formulation_forward.1} parent=47 // pred_fallthru
          _
        %p279 = scmp.lt.s32.totalorder %s23, 1
        %s280 = scalar_select %p279, %s23, 1
        %s281 = smul.addr %s280, 4
        %s282 = scalar_lea.vmem %s0, %s281
        %p283 = pneg %p44
        %p284 = pneg %p41
        %p285 = pneg %p65
        %p286 = pneg %p62
        %p287 = pneg %p86
        %p288 = pneg %p83
        %p289 = pneg %p107
        %p290 = pneg %p104
        %p291 = pneg %p128
        %p292 = pneg %p125
        %p293 = pneg %p149
        %p294 = pneg %p146
        %p295 = pneg %p170
        %p296 = pneg %p167
        %p297 = pneg %p196
        %p298 = pneg %p193
        %s299 = sand.u32 %s183, 1
        %s300 = scalar_lea.sflag [#allocation4], %s299
        %s301 = sand.u32 %s183, 1
        %s302 = smul.addr %s301, 8
        %s303 = scalar_lea.vmem [#allocation7], %s302
        %p304 = scmp.lt.s32.totalorder %s23, 1
        %s305 = scalar_select %p304, %s23, 1
        %s306 = smul.addr %s305, 4
        %s307 = scalar_lea.vmem %s0, %s306
        %v309 = vld [vmem:[%s307] sm:$0xf]
        %v310 = vld [vmem:[%s1] sm:$0xf]
        %v311 = vld [vmem:[%s1 + $0x4] sm:$0x1]
        %v312 = vld [vmem:[%s2] sm:$0x1]
        %v314 = vperm.slane %v312, 0
        %v318 = vunpack.c.l.b16 %v310
        %v319 = vunpack.c.l.b16 %v311
        %v320 = vpack.c.b16 %v319, %v318
        %vm321 = vcmask 80896
        %v323 = vsel %vm321, %v309, 0
        %vm325 = vcmask 1044480
        %v327 = vsel %vm325, %v320, 0
        %329 = vmatpush.bf16.msra.mxu0 0
        %330 = vmatpush.bf16.msra.mxu0 0
        %331 = vmatpush.bf16.msra.mxu0 0
        %332 = vmatpush.bf16.msra.mxu0 0
        %333 = vmatpush.bf16.msra.mxu0 0
        %334 = vmatpush.bf16.msra.mxu0 0
        %335 = vmatpush.bf16.msra.mxu0 0
        %336 = vmatpush.bf16.msra.mxu0 %v327
        %337 = vmatmul.bf16.gmra.mxu0 %v323
        %v338 = vpop.f32.mrf.mxu0
        %v339 = vadd.f32 %v314, %v338
        %v340 = vpop.f32.mrf.mxu0
        %341 = vdwg.mxu0
        %v342 = vmax.f32 %v339, 0.0
        %v343 = vpack.c.bf16 %v342, %v342
        %v344 = vld [vmem:[#allocation2] sm:$0xff]
        %v345 = vld [vmem:[#allocation2 + $0x8] sm:$0xff]
        %v346 = vld [vmem:[#allocation2 + $0x10] sm:$0xff]
        %v347 = vld [vmem:[#allocation2 + $0x18] sm:$0xff]
        %v348 = vld [vmem:[#allocation2 + $0x20] sm:$0xff]
        %v349 = vld [vmem:[#allocation2 + $0x28] sm:$0xff]
        %v350 = vld [vmem:[#allocation2 + $0x30] sm:$0xff]
        %v351 = vld [vmem:[#allocation2 + $0x38] sm:$0xff]
        %v352 = vld [vmem:[#allocation2 + $0x40] sm:$0xff]
        %v353 = vld [vmem:[#allocation2 + $0x48] sm:$0xff]
        %v354 = vld [vmem:[#allocation2 + $0x50] sm:$0xff]
        %v355 = vld [vmem:[#allocation2 + $0x58] sm:$0xff]
        %v356 = vld [vmem:[#allocation2 + $0x60] sm:$0xff]
        %v357 = vld [vmem:[#allocation2 + $0x68] sm:$0xff]
        %v358 = vld [vmem:[#allocation2 + $0x70] sm:$0xff]
        %v359 = vld [vmem:[#allocation2 + $0x78] sm:$0xff]
        %v360 = vld [vmem:[%s4] sm:$0x3]
        %v362 = vperm.slane %v360, 0
        %v363 = vperm.slane %v360, 1
        %v382 = vunpack.c.l.b16 %v344
        %v383 = vunpack.c.h.b16 %v344
        %v384 = vunpack.c.l.b16 %v345
        %v385 = vunpack.c.h.b16 %v345
        %v386 = vunpack.c.l.b16 %v346
        %v387 = vunpack.c.h.b16 %v346
        %v388 = vunpack.c.l.b16 %v347
        %v389 = vunpack.c.h.b16 %v347
        %v390 = vunpack.c.l.b16 %v348
        %v391 = vunpack.c.h.b16 %v348
        %v392 = vunpack.c.l.b16 %v349
        %v393 = vunpack.c.h.b16 %v349
        %v394 = vunpack.c.l.b16 %v350
        %v395 = vunpack.c.h.b16 %v350
        %v396 = vunpack.c.l.b16 %v351
        %v397 = vunpack.c.h.b16 %v351
        %v398 = vunpack.c.l.b16 %v352
        %v399 = vunpack.c.h.b16 %v352
        %v400 = vunpack.c.l.b16 %v353
        %v401 = vunpack.c.h.b16 %v353
        %v402 = vunpack.c.l.b16 %v354
        %v403 = vunpack.c.h.b16 %v354
        %v404 = vunpack.c.l.b16 %v355
        %v405 = vunpack.c.h.b16 %v355
        %v406 = vunpack.c.l.b16 %v356
        %v407 = vunpack.c.h.b16 %v356
        %v408 = vunpack.c.l.b16 %v357
        %v409 = vunpack.c.h.b16 %v357
        %v410 = vunpack.c.l.b16 %v358
        %v411 = vunpack.c.h.b16 %v358
        %v412 = vunpack.c.l.b16 %v359
        %v413 = vunpack.c.h.b16 %v359
        %v414 = vpack.c.b16 %v384, %v382
        %v415 = vpack.c.b16 %v385, %v383
        %v416 = vpack.c.b16 %v388, %v386
        %v417 = vpack.c.b16 %v389, %v387
        %v418 = vpack.c.b16 %v392, %v390
        %v419 = vpack.c.b16 %v393, %v391
        %v420 = vpack.c.b16 %v396, %v394
        %v421 = vpack.c.b16 %v397, %v395
        %v422 = vpack.c.b16 %v400, %v398
        %v423 = vpack.c.b16 %v401, %v399
        %v424 = vpack.c.b16 %v404, %v402
        %v425 = vpack.c.b16 %v405, %v403
        %v426 = vpack.c.b16 %v408, %v406
        %v427 = vpack.c.b16 %v409, %v407
        %v428 = vpack.c.b16 %v412, %v410
        %v429 = vpack.c.b16 %v413, %v411
        %446 = vmatpush.bf16.msra.mxu0 %v428
        %447 = vmatpush.bf16.msra.mxu0 %v426
        %448 = vmatpush.bf16.msra.mxu0 %v424
        %449 = vmatpush.bf16.msra.mxu0 %v422
        %450 = vmatpush.bf16.msra.mxu0 %v420
        %451 = vmatpush.bf16.msra.mxu0 %v418
        %452 = vmatpush.bf16.msra.mxu0 %v416
        %453 = vmatpush.bf16.msra.mxu0 %v414
        %454 = vmatmul.bf16.gmra.mxu0 %v343
        %v455 = vpop.f32.mrf.mxu0
        %v456 = vadd.f32 %v362, %v455
        %v457 = vpop.f32.mrf.mxu0
        %458 = vdwg.mxu0
        %459 = vmatpush.bf16.msra.mxu0 %v429
        %460 = vmatpush.bf16.msra.mxu0 %v427
        %461 = vmatpush.bf16.msra.mxu0 %v425
        %462 = vmatpush.bf16.msra.mxu0 %v423
        %463 = vmatpush.bf16.msra.mxu0 %v421
        %464 = vmatpush.bf16.msra.mxu0 %v419
        %465 = vmatpush.bf16.msra.mxu0 %v417
        %466 = vmatpush.bf16.msra.mxu0 %v415
        %467 = vmatmul.bf16.gmra.mxu0 %v343
        %v468 = vpop.f32.mrf.mxu0
        %v469 = vadd.f32 %v363, %v468
        %v470 = vpop.f32.mrf.mxu0
        %471 = vdwg.mxu0
        %v472 = vmax.f32 %v456, 0.0
        %v473 = vmax.f32 %v469, 0.0
        %v474 = vpack.c.bf16 %v472, %v472
        %v475 = vpack.c.bf16 %v473, %v473
        %v476 = vld [vmem:[#allocation5] sm:$0xff]
        %v477 = vld [vmem:[#allocation5 + $0x8] sm:$0xff]
        %v478 = vld [vmem:[#allocation5 + $0x10] sm:$0xff]
        %v479 = vld [vmem:[#allocation5 + $0x18] sm:$0xff]
        %v480 = vld [vmem:[#allocation5 + $0x20] sm:$0xff]
        %v481 = vld [vmem:[#allocation5 + $0x28] sm:$0xff]
        %v482 = vld [vmem:[#allocation5 + $0x30] sm:$0xff]
        %v483 = vld [vmem:[#allocation5 + $0x38] sm:$0xff]
        %v484 = vld [vmem:[#allocation5 + $0x40] sm:$0xff]
        %v485 = vld [vmem:[#allocation5 + $0x48] sm:$0xff]
        %v486 = vld [vmem:[#allocation5 + $0x50] sm:$0xff]
        %v487 = vld [vmem:[#allocation5 + $0x58] sm:$0xff]
        %v488 = vld [vmem:[#allocation5 + $0x60] sm:$0xff]
        %v489 = vld [vmem:[#allocation5 + $0x68] sm:$0xff]
        %v490 = vld [vmem:[#allocation5 + $0x70] sm:$0xff]
        %v491 = vld [vmem:[#allocation5 + $0x78] sm:$0xff]
        %v492 = vld [vmem:[#allocation5 + $0x80] sm:$0xff]
        %v493 = vld [vmem:[#allocation5 + $0x88] sm:$0xff]
        %v494 = vld [vmem:[#allocation5 + $0x90] sm:$0xff]
        %v495 = vld [vmem:[#allocation5 + $0x98] sm:$0xff]
        %v496 = vld [vmem:[#allocation5 + $0xa0] sm:$0xff]
        %v497 = vld [vmem:[#allocation5 + $0xa8] sm:$0xff]
        %v498 = vld [vmem:[#allocation5 + $0xb0] sm:$0xff]
        %v499 = vld [vmem:[#allocation5 + $0xb8] sm:$0xff]
        %v500 = vld [vmem:[#allocation5 + $0xc0] sm:$0xff]
        %v501 = vld [vmem:[#allocation5 + $0xc8] sm:$0xff]
        %v502 = vld [vmem:[#allocation5 + $0xd0] sm:$0xff]
        %v503 = vld [vmem:[#allocation5 + $0xd8] sm:$0xff]
        %v504 = vld [vmem:[#allocation5 + $0xe0] sm:$0xff]
        %v505 = vld [vmem:[#allocation5 + $0xe8] sm:$0xff]
        %v506 = vld [vmem:[#allocation5 + $0xf0] sm:$0xff]
        %v507 = vld [vmem:[#allocation5 + $0xf8] sm:$0xff]
        %v508 = vld [vmem:[%s6] sm:$0x3]
        %v510 = vperm.slane %v508, 0
        %v511 = vperm.slane %v508, 1
        %v546 = vunpack.c.l.b16 %v476
        %v547 = vunpack.c.h.b16 %v476
        %v548 = vunpack.c.l.b16 %v477
        %v549 = vunpack.c.h.b16 %v477
        %v550 = vunpack.c.l.b16 %v478
        %v551 = vunpack.c.h.b16 %v478
        %v552 = vunpack.c.l.b16 %v479
        %v553 = vunpack.c.h.b16 %v479
        %v554 = vunpack.c.l.b16 %v480
        %v555 = vunpack.c.h.b16 %v480
        %v556 = vunpack.c.l.b16 %v481
        %v557 = vunpack.c.h.b16 %v481
        %v558 = vunpack.c.l.b16 %v482
        %v559 = vunpack.c.h.b16 %v482
        %v560 = vunpack.c.l.b16 %v483
        %v561 = vunpack.c.h.b16 %v483
        %v562 = vunpack.c.l.b16 %v484
        %v563 = vunpack.c.h.b16 %v484
        %v564 = vunpack.c.l.b16 %v485
        %v565 = vunpack.c.h.b16 %v485
        %v566 = vunpack.c.l.b16 %v486
        %v567 = vunpack.c.h.b16 %v486
        %v568 = vunpack.c.l.b16 %v487
        %v569 = vunpack.c.h.b16 %v487
        %v570 = vunpack.c.l.b16 %v488
        %v571 = vunpack.c.h.b16 %v488
        %v572 = vunpack.c.l.b16 %v489
        %v573 = vunpack.c.h.b16 %v489
        %v574 = vunpack.c.l.b16 %v490
        %v575 = vunpack.c.h.b16 %v490
        %v576 = vunpack.c.l.b16 %v491
        %v577 = vunpack.c.h.b16 %v491
        %v578 = vunpack.c.l.b16 %v492
        %v579 = vunpack.c.h.b16 %v492
        %v580 = vunpack.c.l.b16 %v493
        %v581 = vunpack.c.h.b16 %v493
        %v582 = vunpack.c.l.b16 %v494
        %v583 = vunpack.c.h.b16 %v494
        %v584 = vunpack.c.l.b16 %v495
        %v585 = vunpack.c.h.b16 %v495
        %v586 = vunpack.c.l.b16 %v496
        %v587 = vunpack.c.h.b16 %v496
        %v588 = vunpack.c.l.b16 %v497
        %v589 = vunpack.c.h.b16 %v497
        %v590 = vunpack.c.l.b16 %v498
        %v591 = vunpack.c.h.b16 %v498
        %v592 = vunpack.c.l.b16 %v499
        %v593 = vunpack.c.h.b16 %v499
        %v594 = vunpack.c.l.b16 %v500
        %v595 = vunpack.c.h.b16 %v500
        %v596 = vunpack.c.l.b16 %v501
        %v597 = vunpack.c.h.b16 %v501
        %v598 = vunpack.c.l.b16 %v502
        %v599 = vunpack.c.h.b16 %v502
        %v600 = vunpack.c.l.b16 %v503
        %v601 = vunpack.c.h.b16 %v503
        %v602 = vunpack.c.l.b16 %v504
        %v603 = vunpack.c.h.b16 %v504
        %v604 = vunpack.c.l.b16 %v505
        %v605 = vunpack.c.h.b16 %v505
        %v606 = vunpack.c.l.b16 %v506
        %v607 = vunpack.c.h.b16 %v506
        %v608 = vunpack.c.l.b16 %v507
        %v609 = vunpack.c.h.b16 %v507
        %v610 = vpack.c.b16 %v548, %v546
        %v611 = vpack.c.b16 %v549, %v547
        %v612 = vpack.c.b16 %v552, %v550
        %v613 = vpack.c.b16 %v553, %v551
        %v614 = vpack.c.b16 %v556, %v554
        %v615 = vpack.c.b16 %v557, %v555
        %v616 = vpack.c.b16 %v560, %v558
        %v617 = vpack.c.b16 %v561, %v559
        %v618 = vpack.c.b16 %v564, %v562
        %v619 = vpack.c.b16 %v565, %v563
        %v620 = vpack.c.b16 %v568, %v566
        %v621 = vpack.c.b16 %v569, %v567
        %v622 = vpack.c.b16 %v572, %v570
        %v623 = vpack.c.b16 %v573, %v571
        %v624 = vpack.c.b16 %v576, %v574
        %v625 = vpack.c.b16 %v577, %v575
        %v626 = vpack.c.b16 %v580, %v578
        %v627 = vpack.c.b16 %v581, %v579
        %v628 = vpack.c.b16 %v584, %v582
        %v629 = vpack.c.b16 %v585, %v583
        %v630 = vpack.c.b16 %v588, %v586
        %v631 = vpack.c.b16 %v589, %v587
        %v632 = vpack.c.b16 %v592, %v590
        %v633 = vpack.c.b16 %v593, %v591
        %v634 = vpack.c.b16 %v596, %v594
        %v635 = vpack.c.b16 %v597, %v595
        %v636 = vpack.c.b16 %v600, %v598
        %v637 = vpack.c.b16 %v601, %v599
        %v638 = vpack.c.b16 %v604, %v602
        %v639 = vpack.c.b16 %v605, %v603
        %v640 = vpack.c.b16 %v608, %v606
        %v641 = vpack.c.b16 %v609, %v607
        %674 = vmatpush.bf16.msra.mxu0 %v624
        %675 = vmatpush.bf16.msra.mxu0 %v622
        %676 = vmatpush.bf16.msra.mxu0 %v620
        %677 = vmatpush.bf16.msra.mxu0 %v618
        %678 = vmatpush.bf16.msra.mxu0 %v616
        %679 = vmatpush.bf16.msra.mxu0 %v614
        %680 = vmatpush.bf16.msra.mxu0 %v612
        %681 = vmatpush.bf16.msra.mxu0 %v610
        %682 = vmatmul.bf16.gmra.mxu0 %v474
        %v683 = vpop.f32.mrf.mxu0
        %v684 = vadd.f32 %v510, %v683
        %v685 = vpop.f32.mrf.mxu0
        %686 = vdwg.mxu0
        %687 = vmatpush.bf16.msra.mxu0 %v640
        %688 = vmatpush.bf16.msra.mxu0 %v638
        %689 = vmatpush.bf16.msra.mxu0 %v636
        %690 = vmatpush.bf16.msra.mxu0 %v634
        %691 = vmatpush.bf16.msra.mxu0 %v632
        %692 = vmatpush.bf16.msra.mxu0 %v630
        %693 = vmatpush.bf16.msra.mxu0 %v628
        %694 = vmatpush.bf16.msra.mxu0 %v626
        %695 = vmatmul.bf16.gmra.mxu0 %v475
        %v696 = vpop.f32.mrf.mxu0
        %v697 = vadd.f32 %v684, %v696
        %v698 = vpop.f32.mrf.mxu0
        %699 = vdwg.mxu0
        %700 = vmatpush.bf16.msra.mxu0 %v625
        %701 = vmatpush.bf16.msra.mxu0 %v623
        %702 = vmatpush.bf16.msra.mxu0 %v621
        %703 = vmatpush.bf16.msra.mxu0 %v619
        %704 = vmatpush.bf16.msra.mxu0 %v617
        %705 = vmatpush.bf16.msra.mxu0 %v615
        %706 = vmatpush.bf16.msra.mxu0 %v613
        %707 = vmatpush.bf16.msra.mxu0 %v611
        %708 = vmatmul.bf16.gmra.mxu0 %v474
        %v709 = vpop.f32.mrf.mxu0
        %v710 = vadd.f32 %v511, %v709
        %v711 = vpop.f32.mrf.mxu0
        %712 = vdwg.mxu0
        %713 = vmatpush.bf16.msra.mxu0 %v641
        %714 = vmatpush.bf16.msra.mxu0 %v639
        %715 = vmatpush.bf16.msra.mxu0 %v637
        %716 = vmatpush.bf16.msra.mxu0 %v635
        %717 = vmatpush.bf16.msra.mxu0 %v633
        %718 = vmatpush.bf16.msra.mxu0 %v631
        %719 = vmatpush.bf16.msra.mxu0 %v629
        %720 = vmatpush.bf16.msra.mxu0 %v627
        %721 = vmatmul.bf16.gmra.mxu0 %v475
        %v722 = vpop.f32.mrf.mxu0
        %v723 = vadd.f32 %v710, %v722
        %v724 = vpop.f32.mrf.mxu0
        %725 = vdwg.mxu0
        %v726 = vmax.f32 %v697, 0.0
        %v727 = vmax.f32 %v723, 0.0
        %v728 = vpack.c.bf16 %v727, %v726
        %729 = vst [vmem:[%s303] sm:$0xff] %v728
        %s730 = sand.u32 %s183, 1
        %s731 = scalar_lea.sflag [#allocation4], %s730
        %s732 = sand.u32 %s183, 1
        %s733 = smul.addr %s732, 8
        %s734 = scalar_lea.vmem [#allocation7], %s733
        // Predicated region
        $region57: #{features_formulation_forward.1} parent=47 // pred_check
          %p735 = pneg %p193
        $region58: #{features_formulation_forward.1} parent=47 // pred_check_branch
          %737 = sbr.rel (%p735) target = $region60
        $region59: #{features_formulation_forward.1} parent=47 // pred_region
          %739 = vsyncadd %s731, 0
          %s740 = smul.addr %s23, 2
          %s741 = smul.addr %s740, 4
          %s742 = scalar_lea.hbm %s7, %s741
          %s744 = sshll.u32 %s734, 4
          %s745 = int_to_ptr.vmem [resolvable:$true] %s744
          %s746 = sshll.u32 %s742, 4
          %s747 = int_to_ptr.hbm [resolvable:$true] %s746
          %749 = dma.vmem_to_hbm [thread:$0]  %s745, 128, %s747, %s731
        $region60: #{features_formulation_forward.1} parent=47 // pred_fallthru
          _
      $region48: #{features_formulation_forward.1} parent=5 // pred_fallthru
        _
      %p750 = scmp.le.s32.totalorder 2, %s18
      // Predicated region
      $region61: #{features_formulation_forward.1} parent=5 // pred_check
        %p751 = pneg %p750
      $region62: #{features_formulation_forward.1} parent=5 // pred_check_branch
        %753 = sbr.rel (%p751) target = $region64
      $region63: #{features_formulation_forward.1} parent=5 // pred_region
        %s754 = ssub.s32 %s18, 2
        // Predicated region
        $region65: #{features_formulation_forward.1} parent=63 // pred_check
          %p755 = pneg %p199
        $region66: #{features_formulation_forward.1} parent=63 // pred_check_branch
          %757 = sbr.rel (%p755) target = $region68
        $region67: #{features_formulation_forward.1} parent=63 // pred_region
          %s758 = sand.u32 %s184, 1
          %s759 = scalar_lea.sflag [#allocation4], %s758
          %s760 = sand.u32 %s184, 1
          %s761 = smul.addr %s760, 8
          %s762 = scalar_lea.vmem [#allocation7], %s761
          %764 = dma.done %s759, 128
        $region68: #{features_formulation_forward.1} parent=63 // pred_fallthru
          _
      $region64: #{features_formulation_forward.1} parent=5 // pred_fallthru
        _
    $region6: #{features_formulation_forward.1} parent=1 // loop_footer
      %s22 = sadd.s32 1, %s18
    $region7: #{features_formulation_forward.1} parent=1 // loop_footer_branch
      %17 = sbr.rel target = $region3
    $region8: #{features_formulation_forward.1} parent=1 // loop_exit
      _
    %765 = vsyncpa [#allocation3], 1
    %s766 = scalar_lea.sflag [#allocation3], 1
    %767 = vsyncpa %s766, 1
    %768 = vsyncpa [#allocation6], 1
    %769 = vsyncpa [#allocation4], 1
    %s770 = scalar_lea.sflag [#allocation4], 1
    %771 = vsyncpa %s770, 1

</llo_original>
